<compile_context>
chip_gen: v5e
topology: v5e:2x2
jax: 0.10.0
libtpu: 0.0.40
codegen_flags: <defaults>
</compile_context>

<pallas_src>
import jax
import jax.numpy as jnp
import numpy as np
from jax.experimental import pallas as pl
from jax.experimental.pallas import tpu as pltpu


_VMEM = pl.BlockSpec(memory_space=pltpu.MemorySpace.VMEM)
_VMEM_LIMIT = 32 * 1024 * 1024  # explicit scoped-VMEM budget; safe on v5e/v6e/v7x


# -----------------------------------------------------------------------------
# Kernel 1: 3x3 conv (3 row-shifted matmuls) + bias + ReLU + global-avg-pool.
#           One grid step = `imgs_per_tile` whole images; axis is "parallel".
# -----------------------------------------------------------------------------
def conv_gap_forward(ew, wk, bc, *, H, W, imgs_per_tile):
    # ew: (B, (H+2)*W, 3*Cin) bf16  -- W-expanded taps, H zero-padded rows
    # wk: (3, 3*Cin, Ftot)    bf16  -- per-kh weights, [ssl | match] on Ftot
    # bc: (1, Ftot)           f32
    B, hp2w, k3 = ew.shape
    ftot = wk.shape[-1]
    HW = H * W
    inv_hw = 1.0 / HW
    assert hp2w == (H + 2) * W and B % imgs_per_tile == 0
    steps = B // imgs_per_tile

    def kernel(ew_ref, wk_ref, bc_ref, feat_ref):
        pooled = []
        for img in range(imgs_per_tile):               # static unroll (small)
            x = ew_ref[img]                             # ((H+2)*W, 3*Cin) bf16
            # kh taps = sublane-aligned row shifts of the resident block.
            acc = jnp.dot(x[0:HW, :], wk_ref[0],
                          preferred_element_type=jnp.float32)
            acc = acc + jnp.dot(x[W:W + HW, :], wk_ref[1],
                                preferred_element_type=jnp.float32)
            acc = acc + jnp.dot(x[2 * W:2 * W + HW, :], wk_ref[2],
                                preferred_element_type=jnp.float32)
            acc = jnp.maximum(acc + bc_ref[...], 0.0)   # bias + ReLU, (HW, Ftot)
            # GAP: sublane reduce, 1/HW folded into a scalar multiply.
            pooled.append(jnp.sum(acc, axis=0, keepdims=True) * inv_hw)
        feat_ref[0] = jnp.concatenate(pooled, axis=0)   # (imgs_per_tile, Ftot)

    out = pl.pallas_call(
        kernel,
        out_shape=jax.ShapeDtypeStruct((steps, imgs_per_tile, ftot), jnp.float32),
        grid_spec=pltpu.PrefetchScalarGridSpec(
            num_scalar_prefetch=0,
            grid=(steps,),
            in_specs=[
                pl.BlockSpec((imgs_per_tile, hp2w, k3), lambda i: (i, 0, 0)),
                pl.BlockSpec((3, k3, ftot), lambda i: (0, 0, 0)),
                pl.BlockSpec((1, ftot), lambda i: (0, 0)),
            ],
            out_specs=pl.BlockSpec((1, imgs_per_tile, ftot), lambda i: (i, 0, 0)),
        ),
        compiler_params=pltpu.CompilerParams(
            dimension_semantics=("parallel",),
            vmem_limit_bytes=_VMEM_LIMIT),
    )(ew, wk, bc)
    return out.reshape(B, ftot)


# -----------------------------------------------------------------------------
# Kernel 2: both projector MLPs (Linear -> ReLU -> Linear) fused with
#           block-diagonal stacked weights; tiny, grid-less.
# -----------------------------------------------------------------------------
def _proj_kernel(feat_ref, w1_ref, b1_ref, w2_ref, b2_ref, emb_ref):
    h = jnp.dot(feat_ref[...].astype(jnp.bfloat16), w1_ref[...],
                preferred_element_type=jnp.float32)
    h = jnp.maximum(h + b1_ref[...], 0.0)
    e = jnp.dot(h.astype(jnp.bfloat16), w2_ref[...],
                preferred_element_type=jnp.float32)
    emb_ref[...] = (e + b2_ref[...]).astype(emb_ref.dtype)


def projector_forward(feats, w1, b1, w2, b2):
    B = feats.shape[0]
    ptot = w2.shape[-1]
    return pl.pallas_call(
        _proj_kernel,
        out_shape=jax.ShapeDtypeStruct((B, ptot), jnp.bfloat16),
        in_specs=[_VMEM] * 5,
        out_specs=_VMEM,
        compiler_params=pltpu.CompilerParams(vmem_limit_bytes=_VMEM_LIMIT),
    )(feats, w1, b1, w2, b2)


# -----------------------------------------------------------------------------
# Wrapper-side data prep (pure data movement, only 3x expansion)
# -----------------------------------------------------------------------------
def _w_expanded_taps(x_nhwc):
    """(B,H,W,C) -> (B,(H+2)*W, 3C): zero-pad H & W, expand only the kw taps."""
    B, H, W, C = x_nhwc.shape
    xp = jnp.pad(x_nhwc, ((0, 0), (1, 1), (1, 1), (0, 0)))       # (B,H+2,W+2,C)
    taps = [xp[:, :, kw:kw + W, :] for kw in range(3)]           # 3x (B,H+2,W,C)
    ew = jnp.concatenate(taps, axis=-1)                          # (B,H+2,W,3C)
    return ew.reshape(B, (H + 2) * W, 3 * C)


def _pick_imgs_per_tile(B, H, W, C, ftot, budget_bytes=8 << 20):
    """Largest divisor of B whose per-step VMEM (2x-buffered ew tile + f32
    activation) fits a conservative budget that also works on v7x (64 MiB)."""
    per_img = 2 * ((H + 2) * W * 3 * C * 2) + H * W * ftot * 4
    ipt = max(1, min(B, budget_bytes // max(per_img, 1)))
    if B >= 2:
        ipt = min(ipt, B // 2)     # keep >= 2 grid steps so DMA overlaps compute
    while B % ipt:
        ipt -= 1
    return ipt


# -----------------------------------------------------------------------------
# TripleSSLModel (params as JAX arrays; forward = 2 Pallas calls)
# -----------------------------------------------------------------------------
class TripleSSLModelPallas:
    def __init__(self, key, in_channels=4, feature_dim=64, match_feature_dim=64,
                 projection_dim=32, proj_hidden=512):
        ks = jax.random.split(key, 8)
        s = 0.05
        self.feature_dim = feature_dim
        self.match_feature_dim = match_feature_dim
        self.projection_dim = projection_dim
        self.proj_hidden = proj_hidden
        self.in_channels = in_channels

        # EmbModel (half precision -> bf16): synthetic encoder + projector
        enc_w = (jax.random.normal(ks[0], (3, 3, in_channels, feature_dim)) * s).astype(jnp.bfloat16)
        enc_b = jnp.zeros((feature_dim,), jnp.float32)
        proj_w1 = (jax.random.normal(ks[1], (feature_dim, proj_hidden)) * s).astype(jnp.bfloat16)
        proj_w2 = (jax.random.normal(ks[2], (proj_hidden, projection_dim)) * s).astype(jnp.bfloat16)

        # MatchEncoder: frozen fp32 encoder; conv matmul runs bf16/f32-acc in
        # the kernel (documented deviation).  Projector is half (convert_to_hp).
        menc_w = (jax.random.normal(ks[3], (3, 3, in_channels, match_feature_dim)) * s).astype(jnp.float32)
        menc_b = jnp.zeros((match_feature_dim,), jnp.float32)
        mproj_w1 = (jax.random.normal(ks[4], (match_feature_dim, proj_hidden)) * s).astype(jnp.bfloat16)
        mproj_w2 = (jax.random.normal(ks[5], (proj_hidden, projection_dim)) * s).astype(jnp.bfloat16)

        F1, F2, Hd, P = feature_dim, match_feature_dim, proj_hidden, projection_dim
        C = in_channels

        # Per-kh conv weights laid out to match the W-expanded taps:
        # wk[kh, kw*C + c, f] = w[kh, kw, c, f], with [ssl | match] on the F axis.
        wk_ssl = enc_w.reshape(3, 3 * C, F1)
        wk_match = menc_w.astype(jnp.bfloat16).reshape(3, 3 * C, F2)
        self.wk = jnp.concatenate([wk_ssl, wk_match], axis=-1)          # (3, 3C, F1+F2)
        self.bc = jnp.concatenate([enc_b, menc_b]).reshape(1, F1 + F2)  # f32

        # Block-diagonal projector weights (both heads in one matmul); f32 biases.
        w1_blk = jnp.zeros((F1 + F2, 2 * Hd), jnp.bfloat16)
        w1_blk = w1_blk.at[:F1, :Hd].set(proj_w1)
        w1_blk = w1_blk.at[F1:, Hd:].set(mproj_w1)
        self.w1_blk = w1_blk
        self.b1_cat = jnp.zeros((1, 2 * Hd), jnp.float32)

        w2_blk = jnp.zeros((2 * Hd, 2 * P), jnp.bfloat16)
        w2_blk = w2_blk.at[:Hd, :P].set(proj_w2)
        w2_blk = w2_blk.at[Hd:, P:].set(mproj_w2)
        self.w2_blk = w2_blk
        self.b2_cat = jnp.zeros((1, 2 * P), jnp.float32)

    def __call__(self, x_nchw, only_feats=False):
        B, C, H, W = x_nchw.shape
        x_nhwc = jnp.transpose(x_nchw, (0, 2, 3, 1))               # NCHW -> NHWC
        ew = _w_expanded_taps(x_nhwc).astype(jnp.bfloat16)         # (B,(H+2)W,3C)

        ftot = self.feature_dim + self.match_feature_dim
        ipt = _pick_imgs_per_tile(B, H, W, C, ftot)
        feats = conv_gap_forward(ew, self.wk, self.bc, H=H, W=W, imgs_per_tile=ipt)

        F1, P = self.feature_dim, self.projection_dim
        op = {}
        ssl = {'feat': feats[:, :F1].astype(jnp.bfloat16)}          # half-precision path
        # torch.no_grad() semantics; reference only uses x[B//2:] for matching.
        match = {'feat': jax.lax.stop_gradient(feats[B // 2:, F1:])}  # f32, frozen enc
        if not only_feats:
            embs = projector_forward(feats, self.w1_blk, self.b1_cat,
                                     self.w2_blk, self.b2_cat)
            ssl['emb'] = embs[:, :P]
            match['emb'] = jax.lax.stop_gradient(embs[B // 2:, P:])
        op['ssl'] = ssl
        op['match'] = match
        return op


# -----------------------------------------------------------------------------
# Pure-JAX reference (same bf16-quantized inputs, f32 math) for verification
# -----------------------------------------------------------------------------
def _reference_forward(model, x_nchw):
    B, C, H, W = x_nchw.shape
    HW = H * W
    x_nhwc = jnp.transpose(x_nchw, (0, 2, 3, 1))
    ew = _w_expanded_taps(x_nhwc).astype(jnp.bfloat16).astype(jnp.float32)
    wk = model.wk.astype(jnp.float32)
    acc = jnp.zeros((B, HW, wk.shape[-1]), jnp.float32)
    for kh in range(3):
        acc = acc + jnp.einsum('bpk,kf->bpf', ew[:, kh * W:kh * W + HW, :], wk[kh])
    acc = jnp.maximum(acc + model.bc, 0.0)
    feats = acc.mean(axis=1)
    h = jnp.maximum(feats.astype(jnp.bfloat16).astype(jnp.float32)
                    @ model.w1_blk.astype(jnp.float32) + model.b1_cat, 0.0)
    emb = (h.astype(jnp.bfloat16).astype(jnp.float32)
           @ model.w2_blk.astype(jnp.float32) + model.b2_cat)
    return feats, emb


if __name__ == "__main__":
    key = jax.random.PRNGKey(0)
    k_model, k_x = jax.random.split(key)

    B, C, H, W = 4, 4, 16, 16
    x = jax.random.normal(k_x, (B, C, H, W), jnp.float32)

    model = TripleSSLModelPallas(k_model, in_channels=C,
                                 feature_dim=64, match_feature_dim=64,
                                 projection_dim=32, proj_hidden=512)

    op = jax.block_until_ready(model(x, only_feats=False))

    assert op['ssl']['feat'].shape == (B, 64)
    assert op['ssl']['emb'].shape == (B, 32)
    assert op['match']['feat'].shape == (B // 2, 64)
    assert op['match']['feat'].dtype == jnp.float32
    assert op['match']['emb'].shape == (B // 2, 32)

    # Numerical check against a pure-JAX reference (lenient: bf16 rounding).
    ref_feats, ref_emb = _reference_forward(model, x)
    np.testing.assert_allclose(np.asarray(op['ssl']['feat'], np.float32),
                               np.asarray(ref_feats[:, :64]), rtol=3e-2, atol=3e-2)
    np.testing.assert_allclose(np.asarray(op['match']['feat']),
                               np.asarray(ref_feats[B // 2:, 64:]), rtol=3e-2, atol=3e-2)
    np.testing.assert_allclose(np.asarray(op['ssl']['emb'], np.float32),
                               np.asarray(ref_emb[:, :32]), rtol=3e-2, atol=3e-2)
    np.testing.assert_allclose(np.asarray(op['match']['emb'], np.float32),
                               np.asarray(ref_emb[B // 2:, 32:]), rtol=3e-2, atol=3e-2)

    # only_feats path: single Pallas call, projector skipped.
    op2 = jax.block_until_ready(model(x, only_feats=True))
    assert op2['ssl']['feat'].shape == (B, 64)
    assert 'emb' not in op2['ssl'] and 'emb' not in op2['match']

    print("KERNEL_OK")
</pallas_src>

<mosaic_0001>
module attributes {stable_mosaic.version = 11 : i64} {
  func.func @kernel(%arg0: i32, %arg1: memref<2x288x12xbf16, #tpu.memory_space<vmem>>, %arg2: memref<3x12x128xbf16, #tpu.memory_space<vmem>>, %arg3: memref<1x128xf32, #tpu.memory_space<vmem>>, %arg4: memref<1x2x128xf32, #tpu.memory_space<vmem>>) attributes {dimension_semantics = [#tpu.dimension_semantics<parallel>], iteration_bounds = array<i64: 2>, scalar_prefetch = 0 : i64, scratch_operands = 0 : i64, tpu.core_type = #tpu.core_type<tc>, window_params = [{transform_indices = @transform_0, window_bounds = array<i64: 2, 288, 12>}, {pipeline_mode = #tpu.pipeline_mode<synchronous>, transform_indices = @transform_1, window_bounds = array<i64: 3, 12, 128>}, {pipeline_mode = #tpu.pipeline_mode<synchronous>, transform_indices = @transform_2, window_bounds = array<i64: 1, 128>}, {transform_indices = @transform_3, window_bounds = array<i64: 1, 2, 128>}]} {
    %c0 = arith.constant 0 : index
    %c0_0 = arith.constant 0 : index
    %c0_1 = arith.constant 0 : index
    %0 = vector.load %arg1[%c0, %c0_0, %c0_1] : memref<2x288x12xbf16, #tpu.memory_space<vmem>>, vector<1x288x12xbf16>
    %1 = vector.shape_cast %0 : vector<1x288x12xbf16> to vector<288x12xbf16>
    %2 = vector.extract_strided_slice %1 {offsets = [0, 0], sizes = [256, 12], strides = [1, 1]} : vector<288x12xbf16> to vector<256x12xbf16>
    %c0_2 = arith.constant 0 : index
    %c0_3 = arith.constant 0 : index
    %c0_4 = arith.constant 0 : index
    %3 = vector.load %arg2[%c0_2, %c0_3, %c0_4] : memref<3x12x128xbf16, #tpu.memory_space<vmem>>, vector<1x12x128xbf16>
    %4 = vector.shape_cast %3 : vector<1x12x128xbf16> to vector<12x128xbf16>
    %cst = arith.constant dense<0.000000e+00> : vector<256x128xf32>
    %5 = tpu.matmul %2, %4, %cst {dimension_numbers = #tpu.dot_dimension_numbers<[1], [0], [0], [1], [0, 0, 1, 1], [], []>} : vector<256x12xbf16>, vector<12x128xbf16>, vector<256x128xf32> -> vector<256x128xf32>
    %6 = vector.extract_strided_slice %1 {offsets = [16, 0], sizes = [256, 12], strides = [1, 1]} : vector<288x12xbf16> to vector<256x12xbf16>
    %c1 = arith.constant 1 : index
    %c0_5 = arith.constant 0 : index
    %c0_6 = arith.constant 0 : index
    %7 = vector.load %arg2[%c1, %c0_5, %c0_6] : memref<3x12x128xbf16, #tpu.memory_space<vmem>>, vector<1x12x128xbf16>
    %8 = vector.shape_cast %7 : vector<1x12x128xbf16> to vector<12x128xbf16>
    %cst_7 = arith.constant dense<0.000000e+00> : vector<256x128xf32>
    %9 = tpu.matmul %6, %8, %cst_7 {dimension_numbers = #tpu.dot_dimension_numbers<[1], [0], [0], [1], [0, 0, 1, 1], [], []>} : vector<256x12xbf16>, vector<12x128xbf16>, vector<256x128xf32> -> vector<256x128xf32>
    %10 = arith.addf %5, %9 : vector<256x128xf32>
    %11 = vector.extract_strided_slice %1 {offsets = [32, 0], sizes = [256, 12], strides = [1, 1]} : vector<288x12xbf16> to vector<256x12xbf16>
    %c2 = arith.constant 2 : index
    %c0_8 = arith.constant 0 : index
    %c0_9 = arith.constant 0 : index
    %12 = vector.load %arg2[%c2, %c0_8, %c0_9] : memref<3x12x128xbf16, #tpu.memory_space<vmem>>, vector<1x12x128xbf16>
    %13 = vector.shape_cast %12 : vector<1x12x128xbf16> to vector<12x128xbf16>
    %cst_10 = arith.constant dense<0.000000e+00> : vector<256x128xf32>
    %14 = tpu.matmul %11, %13, %cst_10 {dimension_numbers = #tpu.dot_dimension_numbers<[1], [0], [0], [1], [0, 0, 1, 1], [], []>} : vector<256x12xbf16>, vector<12x128xbf16>, vector<256x128xf32> -> vector<256x128xf32>
    %15 = arith.addf %10, %14 : vector<256x128xf32>
    %c0_11 = arith.constant 0 : index
    %c0_12 = arith.constant 0 : index
    %16 = vector.load %arg3[%c0_11, %c0_12] : memref<1x128xf32, #tpu.memory_space<vmem>>, vector<1x128xf32>
    %17 = vector.broadcast %16 : vector<1x128xf32> to vector<256x128xf32>
    %18 = arith.addf %15, %17 : vector<256x128xf32>
    %cst_13 = arith.constant 0.000000e+00 : f32
    %19 = vector.broadcast %cst_13 : f32 to vector<256x128xf32>
    %20 = arith.maximumf %18, %19 : vector<256x128xf32>
    %cst_14 = arith.constant dense<0.000000e+00> : vector<128xf32>
    %21 = vector.multi_reduction <add>, %20, %cst_14 [0] : vector<256x128xf32> to vector<128xf32>
    %22 = vector.shape_cast %21 : vector<128xf32> to vector<1x128xf32>
    %cst_15 = arith.constant 3.906250e-03 : f32
    %23 = vector.broadcast %cst_15 : f32 to vector<1x128xf32>
    %24 = arith.mulf %22, %23 : vector<1x128xf32>
    %c1_16 = arith.constant 1 : index
    %c0_17 = arith.constant 0 : index
    %c0_18 = arith.constant 0 : index
    %25 = vector.load %arg1[%c1_16, %c0_17, %c0_18] : memref<2x288x12xbf16, #tpu.memory_space<vmem>>, vector<1x288x12xbf16>
    %26 = vector.shape_cast %25 : vector<1x288x12xbf16> to vector<288x12xbf16>
    %27 = vector.extract_strided_slice %26 {offsets = [0, 0], sizes = [256, 12], strides = [1, 1]} : vector<288x12xbf16> to vector<256x12xbf16>
    %c0_19 = arith.constant 0 : index
    %c0_20 = arith.constant 0 : index
    %c0_21 = arith.constant 0 : index
    %28 = vector.load %arg2[%c0_19, %c0_20, %c0_21] : memref<3x12x128xbf16, #tpu.memory_space<vmem>>, vector<1x12x128xbf16>
    %29 = vector.shape_cast %28 : vector<1x12x128xbf16> to vector<12x128xbf16>
    %cst_22 = arith.constant dense<0.000000e+00> : vector<256x128xf32>
    %30 = tpu.matmul %27, %29, %cst_22 {dimension_numbers = #tpu.dot_dimension_numbers<[1], [0], [0], [1], [0, 0, 1, 1], [], []>} : vector<256x12xbf16>, vector<12x128xbf16>, vector<256x128xf32> -> vector<256x128xf32>
    %31 = vector.extract_strided_slice %26 {offsets = [16, 0], sizes = [256, 12], strides = [1, 1]} : vector<288x12xbf16> to vector<256x12xbf16>
    %c1_23 = arith.constant 1 : index
    %c0_24 = arith.constant 0 : index
    %c0_25 = arith.constant 0 : index
    %32 = vector.load %arg2[%c1_23, %c0_24, %c0_25] : memref<3x12x128xbf16, #tpu.memory_space<vmem>>, vector<1x12x128xbf16>
    %33 = vector.shape_cast %32 : vector<1x12x128xbf16> to vector<12x128xbf16>
    %cst_26 = arith.constant dense<0.000000e+00> : vector<256x128xf32>
    %34 = tpu.matmul %31, %33, %cst_26 {dimension_numbers = #tpu.dot_dimension_numbers<[1], [0], [0], [1], [0, 0, 1, 1], [], []>} : vector<256x12xbf16>, vector<12x128xbf16>, vector<256x128xf32> -> vector<256x128xf32>
    %35 = arith.addf %30, %34 : vector<256x128xf32>
    %36 = vector.extract_strided_slice %26 {offsets = [32, 0], sizes = [256, 12], strides = [1, 1]} : vector<288x12xbf16> to vector<256x12xbf16>
    %c2_27 = arith.constant 2 : index
    %c0_28 = arith.constant 0 : index
    %c0_29 = arith.constant 0 : index
    %37 = vector.load %arg2[%c2_27, %c0_28, %c0_29] : memref<3x12x128xbf16, #tpu.memory_space<vmem>>, vector<1x12x128xbf16>
    %38 = vector.shape_cast %37 : vector<1x12x128xbf16> to vector<12x128xbf16>
    %cst_30 = arith.constant dense<0.000000e+00> : vector<256x128xf32>
    %39 = tpu.matmul %36, %38, %cst_30 {dimension_numbers = #tpu.dot_dimension_numbers<[1], [0], [0], [1], [0, 0, 1, 1], [], []>} : vector<256x12xbf16>, vector<12x128xbf16>, vector<256x128xf32> -> vector<256x128xf32>
    %40 = arith.addf %35, %39 : vector<256x128xf32>
    %c0_31 = arith.constant 0 : index
    %c0_32 = arith.constant 0 : index
    %41 = vector.load %arg3[%c0_31, %c0_32] : memref<1x128xf32, #tpu.memory_space<vmem>>, vector<1x128xf32>
    %42 = vector.broadcast %41 : vector<1x128xf32> to vector<256x128xf32>
    %43 = arith.addf %40, %42 : vector<256x128xf32>
    %cst_33 = arith.constant 0.000000e+00 : f32
    %44 = vector.broadcast %cst_33 : f32 to vector<256x128xf32>
    %45 = arith.maximumf %43, %44 : vector<256x128xf32>
    %cst_34 = arith.constant dense<0.000000e+00> : vector<128xf32>
    %46 = vector.multi_reduction <add>, %45, %cst_34 [0] : vector<256x128xf32> to vector<128xf32>
    %47 = vector.shape_cast %46 : vector<128xf32> to vector<1x128xf32>
    %cst_35 = arith.constant 3.906250e-03 : f32
    %48 = vector.broadcast %cst_35 : f32 to vector<1x128xf32>
    %49 = arith.mulf %47, %48 : vector<1x128xf32>
    %50 = tpu.concatenate %24, %49 in 0 : vector<1x128xf32>, vector<1x128xf32> -> vector<2x128xf32>
    %c0_36 = arith.constant 0 : index
    %c0_37 = arith.constant 0 : index
    %c0_38 = arith.constant 0 : index
    %51 = vector.load %arg4[%c0_36, %c0_37, %c0_38] : memref<1x2x128xf32, #tpu.memory_space<vmem>>, vector<1x2x128xf32>
    %52 = vector.shape_cast %51 : vector<1x2x128xf32> to vector<2x128xf32>
    %53 = vector.shape_cast %50 : vector<2x128xf32> to vector<1x2x128xf32>
    tpu.vector_store %arg4[%c0_36, %c0_37, %c0_38], %53 {strides = array<i32>} : memref<1x2x128xf32, #tpu.memory_space<vmem>>, vector<1x2x128xf32>,
    return
  }
  func.func @transform_0(%arg0: i32) -> (i32, i32, i32) {
    %c0_i32 = arith.constant 0 : i32
    %c0_i32_0 = arith.constant 0 : i32
    %c0_i32_1 = arith.constant 0 : i32
    return %arg0, %c0_i32, %c0_i32_0 : i32, i32, i32
  }
  func.func @transform_1(%arg0: i32) -> (i32, i32, i32) {
    %c0_i32 = arith.constant 0 : i32
    %c0_i32_0 = arith.constant 0 : i32
    %c0_i32_1 = arith.constant 0 : i32
    %c0_i32_2 = arith.constant 0 : i32
    return %c0_i32, %c0_i32_0, %c0_i32_1 : i32, i32, i32
  }
  func.func @transform_2(%arg0: i32) -> (i32, i32) {
    %c0_i32 = arith.constant 0 : i32
    %c0_i32_0 = arith.constant 0 : i32
    %c0_i32_1 = arith.constant 0 : i32
    return %c0_i32, %c0_i32_0 : i32, i32
  }
  func.func @transform_3(%arg0: i32) -> (i32, i32, i32) {
    %c0_i32 = arith.constant 0 : i32
    %c0_i32_0 = arith.constant 0 : i32
    %c0_i32_1 = arith.constant 0 : i32
    return %arg0, %c0_i32, %c0_i32_0 : i32, i32, i32
  }
}

</mosaic_0001>

<llo_original>
// kernel: tpu_custom_call.1
$region0: #{tpu_custom_call.1}
  #allocation0 [shape = 'u32[]', space=smem, size = 0x4, offset = 0x4, fixed_abs, tag = 'smem constant byte address 0x4 - core index']
  #allocation1 [shape = 'u32[72,128]{1,0:T(1,128)}', space=vmem, size = 0x9000, scoped, tag = 'internal scratch']
  %s0 = inlined_call_operand.vmem [shape: bf16[4,288,12], index: 0, kind: input, shape index: {}]
  %s1 = inlined_call_operand.vmem [shape: bf16[3,12,128], index: 1, kind: input, shape index: {}]
  %s2 = inlined_call_operand.vmem [shape: f32[1,128], index: 2, kind: input, shape index: {}]
  %s3 = inlined_call_operand.hbm [shape: f32[2,2,128], index: 3, kind: output, shape index: {}]
  %s4 = sld [smem:[#allocation0]]
  $region45: #{tpu_custom_call.1} parent=0
    _
  %s6 = ssub.s32 1, %s4
  %s7 = scalar_select 0, %s6, %s4
  $region1: #{tpu_custom_call.1} parent=0
    #allocation2 [shape = 'u8[2048]{0}', space=vmem, size = 0x800, scoped, tag = 'output window, operand 0']
    #allocation3 [shape = 's32[2]{0}', space=sflag, size = 0x8, scoped, tag = 'scoped memory for tpu_custom_call.1']
    %8 = vsyncpa [#allocation3], 0
    %s9 = scalar_lea.sflag [#allocation3], 1
    %10 = vsyncpa %s9, 0
    loop: start=0, step=1, limit=4
    $region2: #{tpu_custom_call.1} parent=1 // loop_pre_header
      _
    $region3: #{tpu_custom_call.1} parent=1 // loop_header
      %s12 = sphi 0, %s16
      %p13 = scmp.ge.s32.totalorder %s12, 4
      %s22 = sphi 0, %s24
      %s25 = sphi 0, %s22
      %s26 = sphi 0, %s25
      %s42 = sphi 0, %s26
      %s46 = sphi 0, %s46
      %s48 = sphi 0, %s46
      %s49 = sphi 0, %s48
      %s63 = sphi 0, %s49
      %s67 = sphi 0, %s67
      %s69 = sphi 0, %s67
      %s70 = sphi 0, %s69
      %s84 = sphi 0, %s70
      %s90 = sphi 0, %s92
      %s93 = sphi 0, %s90
      %s94 = sphi 0, %s93
      %s110 = sphi 0, %s94
    $region4: #{tpu_custom_call.1} parent=1 // loop_header_branch
      %15 = sbr.rel (%p13) target = $region8
    $region5: #{tpu_custom_call.1} parent=1 // loop_body
      %s17 = ssub.s32 %s12, 1
      %s18 = ssub.s32 %s12, 2
      %s19 = sadd.s32 %s12, 1
      %s20 = ssub.s32 %s12, %s19
      %p21 = scmp.eq.s32.totalorder %s20, 0
      %s23 = sadd.s32 %s22, 1
      %s24 = scalar_select %p21, %s22, %s23
      %p27 = pneg %p21
      %p28 = scmp.eq.s32.totalorder %s12, 1
      %p29 = por %p27, %p28
      %p30 = scmp.ne.s32.totalorder %s22, %s25
      %p31 = scmp.eq.s32.totalorder %s12, 0
      %p32 = por %p30, %p31
      %p33 = scmp.ne.s32.totalorder %s22, %s25
      %p34 = scmp.eq.s32.totalorder %s17, 1
      %p35 = por %p33, %p34
      %p36 = scmp.ne.s32.totalorder %s25, %s26
      %p37 = scmp.eq.s32.totalorder %s17, 0
      %p38 = por %p36, %p37
      %p39 = scmp.ne.s32.totalorder %s25, %s26
      %p40 = scmp.eq.s32.totalorder %s18, 1
      %p41 = por %p39, %p40
      %p43 = scmp.ne.s32.totalorder %s26, %s42
      %p44 = scmp.eq.s32.totalorder %s18, 0
      %p45 = por %p43, %p44
      %s47 = sadd.s32 %s46, 1
      %p50 = scmp.eq.s32.totalorder %s12, 1
      %p51 = scmp.ne.s32.totalorder %s46, %s48
      %p52 = scmp.eq.s32.totalorder %s12, 0
      %p53 = por %p51, %p52
      %p54 = scmp.ne.s32.totalorder %s46, %s48
      %p55 = scmp.eq.s32.totalorder %s17, 1
      %p56 = por %p54, %p55
      %p57 = scmp.ne.s32.totalorder %s48, %s49
      %p58 = scmp.eq.s32.totalorder %s17, 0
      %p59 = por %p57, %p58
      %p60 = scmp.ne.s32.totalorder %s48, %s49
      %p61 = scmp.eq.s32.totalorder %s18, 1
      %p62 = por %p60, %p61
      %p64 = scmp.ne.s32.totalorder %s49, %s63
      %p65 = scmp.eq.s32.totalorder %s18, 0
      %p66 = por %p64, %p65
      %s68 = sadd.s32 %s67, 1
      %p71 = scmp.eq.s32.totalorder %s12, 1
      %p72 = scmp.ne.s32.totalorder %s67, %s69
      %p73 = scmp.eq.s32.totalorder %s12, 0
      %p74 = por %p72, %p73
      %p75 = scmp.ne.s32.totalorder %s67, %s69
      %p76 = scmp.eq.s32.totalorder %s17, 1
      %p77 = por %p75, %p76
      %p78 = scmp.ne.s32.totalorder %s69, %s70
      %p79 = scmp.eq.s32.totalorder %s17, 0
      %p80 = por %p78, %p79
      %p81 = scmp.ne.s32.totalorder %s69, %s70
      %p82 = scmp.eq.s32.totalorder %s18, 1
      %p83 = por %p81, %p82
      %p85 = scmp.ne.s32.totalorder %s70, %s84
      %p86 = scmp.eq.s32.totalorder %s18, 0
      %p87 = por %p85, %p86
      %s88 = ssub.s32 %s12, %s19
      %p89 = scmp.eq.s32.totalorder %s88, 0
      %s91 = sadd.s32 %s90, 1
      %s92 = scalar_select %p89, %s90, %s91
      %p95 = pneg %p89
      %p96 = scmp.eq.s32.totalorder %s12, 1
      %p97 = por %p95, %p96
      %p98 = scmp.ne.s32.totalorder %s90, %s93
      %p99 = scmp.eq.s32.totalorder %s12, 0
      %p100 = por %p98, %p99
      %p101 = scmp.ne.s32.totalorder %s90, %s93
      %p102 = scmp.eq.s32.totalorder %s17, 1
      %p103 = por %p101, %p102
      %p104 = scmp.ne.s32.totalorder %s93, %s94
      %p105 = scmp.eq.s32.totalorder %s17, 0
      %p106 = por %p104, %p105
      %p107 = scmp.ne.s32.totalorder %s93, %s94
      %p108 = scmp.eq.s32.totalorder %s18, 1
      %p109 = por %p107, %p108
      %p111 = scmp.ne.s32.totalorder %s94, %s110
      %p112 = scmp.eq.s32.totalorder %s18, 0
      %p113 = por %p111, %p112
      %p114 = scmp.le.s32.totalorder 1, %s12
      %p115 = scmp.lt.s32.totalorder %s12, 3
      %p116 = pnand %p114, %p115
      %p117 = pneg %p116
      // Predicated region
      $region9: #{tpu_custom_call.1} parent=5 // pred_check
        _
      $region10: #{tpu_custom_call.1} parent=5 // pred_check_branch
        %119 = sbr.rel (%p116) target = $region12
      $region11: #{tpu_custom_call.1} parent=5 // pred_region
        %s120 = ssub.s32 %s12, 1
        // Predicated region
        $region13: #{tpu_custom_call.1} parent=11 // pred_check
          %p121 = pneg %p59
        $region14: #{tpu_custom_call.1} parent=11 // pred_check_branch
          %123 = sbr.rel (%p121) target = $region16
        $region15: #{tpu_custom_call.1} parent=11 // pred_region
          _
        $region16: #{tpu_custom_call.1} parent=11 // pred_fallthru
          _
        // Predicated region
        $region17: #{tpu_custom_call.1} parent=11 // pred_check
          %p124 = pneg %p80
        $region18: #{tpu_custom_call.1} parent=11 // pred_check_branch
          %126 = sbr.rel (%p124) target = $region20
        $region19: #{tpu_custom_call.1} parent=11 // pred_region
          _
        $region20: #{tpu_custom_call.1} parent=11 // pred_fallthru
          _
      $region12: #{tpu_custom_call.1} parent=5 // pred_fallthru
        _
      %p127 = scmp.lt.s32.totalorder %s12, 2
      // Predicated region
      $region21: #{tpu_custom_call.1} parent=5 // pred_check
        %p128 = pneg %p127
      $region22: #{tpu_custom_call.1} parent=5 // pred_check_branch
        %130 = sbr.rel (%p128) target = $region24
      $region23: #{tpu_custom_call.1} parent=5 // pred_region
        // Predicated region
        $region25: #{tpu_custom_call.1} parent=23 // pred_check
          %p131 = pneg %p32
        $region26: #{tpu_custom_call.1} parent=23 // pred_check_branch
          %133 = sbr.rel (%p131) target = $region28
        $region27: #{tpu_custom_call.1} parent=23 // pred_region
          %s134 = smul.u32 2, %s12
          %p135 = scmp.lt.s32.totalorder %s134, 3
          %s136 = scalar_select %p135, %s134, 3
          %s137 = smul.addr %s136, 36
          %s138 = smul.addr %s137, 4
          %s139 = scalar_lea.vmem %s0, %s138
          %s140 = smul.u32 2, %s12
        $region28: #{tpu_custom_call.1} parent=23 // pred_fallthru
          _
      $region24: #{tpu_custom_call.1} parent=5 // pred_fallthru
        _
      %p141 = scmp.le.s32.totalorder 1, %s12
      %p142 = scmp.lt.s32.totalorder %s12, 3
      %p143 = pnand %p141, %p142
      %p144 = pneg %p143
      // Predicated region
      $region29: #{tpu_custom_call.1} parent=5 // pred_check
        _
      $region30: #{tpu_custom_call.1} parent=5 // pred_check_branch
        %146 = sbr.rel (%p143) target = $region32
      $region31: #{tpu_custom_call.1} parent=5 // pred_region
        %s147 = ssub.s32 %s12, 1
        %s148 = smul.u32 2, %s17
        %p149 = scmp.lt.s32.totalorder %s148, 3
        %s150 = scalar_select %p149, %s148, 3
        %s151 = smul.addr %s150, 36
        %s152 = smul.addr %s151, 4
        %s153 = scalar_lea.vmem %s0, %s152
        %p154 = pneg %p38
        %p155 = pneg %p35
        %p156 = pneg %p59
        %p157 = pneg %p56
        %p158 = pneg %p80
        %p159 = pneg %p77
        %p160 = pneg %p106
        %p161 = pneg %p103
        %s162 = sand.u32 %s93, 1
        %s163 = scalar_lea.sflag [#allocation3], %s162
        %s164 = sand.u32 %s93, 1
        %s165 = smul.addr %s164, 2
        %s166 = scalar_lea.vmem [#allocation2], %s165
        %s167 = smul.u32 2, %s17
        %p168 = scmp.lt.s32.totalorder %s167, 3
        %s169 = scalar_select %p168, %s167, 3
        %s170 = smul.addr %s169, 36
        %s171 = smul.addr %s170, 4
        %s172 = scalar_lea.vmem %s0, %s171
        %s173 = smul.u32 2, %s17
        %v175 = vld [vmem:[%s172] sm:$0xf]
        %v176 = vld [vmem:[%s172 + $0x4] sm:$0xf]
        %v177 = vld [vmem:[%s172 + $0x8] sm:$0xf]
        %v178 = vld [vmem:[%s172 + $0xc] sm:$0xf]
        %v179 = vld [vmem:[%s172 + $0x10] sm:$0xf]
        %v180 = vld [vmem:[%s172 + $0x14] sm:$0xf]
        %v181 = vld [vmem:[%s172 + $0x18] sm:$0xf]
        %v182 = vld [vmem:[%s172 + $0x1c] sm:$0xf]
        %v183 = vld [vmem:[%s172 + $0x20] sm:$0xf]
        %v184 = vld [vmem:[%s172 + $0x24] sm:$0xf]
        %v185 = vld [vmem:[%s172 + $0x28] sm:$0xf]
        %v186 = vld [vmem:[%s172 + $0x2c] sm:$0xf]
        %v187 = vld [vmem:[%s172 + $0x30] sm:$0xf]
        %v188 = vld [vmem:[%s172 + $0x34] sm:$0xf]
        %v189 = vld [vmem:[%s172 + $0x38] sm:$0xf]
        %v190 = vld [vmem:[%s172 + $0x3c] sm:$0xf]
        %v191 = vld [vmem:[%s172 + $0x40] sm:$0xf]
        %v192 = vld [vmem:[%s172 + $0x44] sm:$0xf]
        %v193 = vld [vmem:[%s172 + $0x48] sm:$0xf]
        %v194 = vld [vmem:[%s172 + $0x4c] sm:$0xf]
        %v195 = vld [vmem:[%s172 + $0x50] sm:$0xf]
        %v196 = vld [vmem:[%s172 + $0x54] sm:$0xf]
        %v197 = vld [vmem:[%s172 + $0x58] sm:$0xf]
        %v198 = vld [vmem:[%s172 + $0x5c] sm:$0xf]
        %v199 = vld [vmem:[%s172 + $0x60] sm:$0xf]
        %v200 = vld [vmem:[%s172 + $0x64] sm:$0xf]
        %v201 = vld [vmem:[%s172 + $0x68] sm:$0xf]
        %v202 = vld [vmem:[%s172 + $0x6c] sm:$0xf]
        %v203 = vld [vmem:[%s172 + $0x70] sm:$0xf]
        %v204 = vld [vmem:[%s172 + $0x74] sm:$0xf]
        %v205 = vld [vmem:[%s172 + $0x78] sm:$0xf]
        %v206 = vld [vmem:[%s172 + $0x7c] sm:$0xf]
        %v207 = vld [vmem:[%s172 + $0x80] sm:$0xf]
        %v208 = vld [vmem:[%s172 + $0x84] sm:$0xf]
        %v209 = vld [vmem:[%s172 + $0x88] sm:$0xf]
        %v210 = vld [vmem:[%s172 + $0x8c] sm:$0xf]
        %v211 = vld [vmem:[%s1] sm:$0xf]
        %v212 = vld [vmem:[%s1 + $0x4] sm:$0x3]
        %s213 = scalar_lea.vmem %s1, 8
        %v214 = vld [vmem:[%s213] sm:$0xf]
        %v215 = vld [vmem:[%s213 + $0x4] sm:$0x3]
        %v248 = vunpack.c.l.b16 %v177
        %v249 = vunpack.c.l.b16 %v178
        %v250 = vunpack.c.l.b16 %v179
        %v251 = vunpack.c.l.b16 %v180
        %v252 = vunpack.c.l.b16 %v181
        %v253 = vunpack.c.l.b16 %v182
        %v254 = vunpack.c.l.b16 %v183
        %v255 = vunpack.c.l.b16 %v184
        %v256 = vunpack.c.l.b16 %v185
        %v257 = vunpack.c.l.b16 %v186
        %v258 = vunpack.c.l.b16 %v187
        %v259 = vunpack.c.l.b16 %v188
        %v260 = vunpack.c.l.b16 %v189
        %v261 = vunpack.c.l.b16 %v190
        %v262 = vunpack.c.l.b16 %v191
        %v263 = vunpack.c.l.b16 %v192
        %v264 = vunpack.c.l.b16 %v193
        %v265 = vunpack.c.l.b16 %v194
        %v266 = vunpack.c.l.b16 %v195
        %v267 = vunpack.c.l.b16 %v196
        %v268 = vunpack.c.l.b16 %v197
        %v269 = vunpack.c.l.b16 %v198
        %v270 = vunpack.c.l.b16 %v199
        %v271 = vunpack.c.l.b16 %v200
        %v272 = vunpack.c.l.b16 %v201
        %v273 = vunpack.c.l.b16 %v202
        %v274 = vunpack.c.l.b16 %v203
        %v275 = vunpack.c.l.b16 %v204
        %v276 = vunpack.c.l.b16 %v205
        %v277 = vunpack.c.l.b16 %v206
        %v278 = vunpack.c.l.b16 %v207
        %v279 = vunpack.c.l.b16 %v208
        %v280 = vpack.c.b16 %v249, %v248
        %v281 = vpack.c.b16 %v251, %v250
        %v282 = vpack.c.b16 %v253, %v252
        %v283 = vpack.c.b16 %v255, %v254
        %v284 = vpack.c.b16 %v257, %v256
        %v285 = vpack.c.b16 %v259, %v258
        %v286 = vpack.c.b16 %v261, %v260
        %v287 = vpack.c.b16 %v263, %v262
        %v288 = vpack.c.b16 %v265, %v264
        %v289 = vpack.c.b16 %v267, %v266
        %v290 = vpack.c.b16 %v269, %v268
        %v291 = vpack.c.b16 %v271, %v270
        %v292 = vpack.c.b16 %v273, %v272
        %v293 = vpack.c.b16 %v275, %v274
        %v294 = vpack.c.b16 %v277, %v276
        %v295 = vpack.c.b16 %v279, %v278
        %v298 = vunpack.c.l.b16 %v214
        %v299 = vunpack.c.l.b16 %v215
        %v300 = vpack.c.b16 %v299, %v298
        %vm301 = vcmask 97280
        %v303 = vsel %vm301, %v280, 0
        %v306 = vsel %vm301, %v281, 0
        %v309 = vsel %vm301, %v282, 0
        %v312 = vsel %vm301, %v283, 0
        %v315 = vsel %vm301, %v284, 0
        %v318 = vsel %vm301, %v285, 0
        %v321 = vsel %vm301, %v286, 0
        %v324 = vsel %vm301, %v287, 0
        %v327 = vsel %vm301, %v288, 0
        %v330 = vsel %vm301, %v289, 0
        %v333 = vsel %vm301, %v290, 0
        %v336 = vsel %vm301, %v291, 0
        %v339 = vsel %vm301, %v292, 0
        %v342 = vsel %vm301, %v293, 0
        %v345 = vsel %vm301, %v294, 0
        %v348 = vsel %vm301, %v295, 0
        %vm350 = vcmask 1045504
        %v352 = vsel %vm350, %v300, 0
        %354 = vmatpush.bf16.msra.mxu0 0
        %355 = vmatpush.bf16.msra.mxu0 0
        %356 = vmatpush.bf16.msra.mxu0 0
        %357 = vmatpush.bf16.msra.mxu0 0
        %358 = vmatpush.bf16.msra.mxu0 0
        %359 = vmatpush.bf16.msra.mxu0 0
        %360 = vmatpush.bf16.msra.mxu0 0
        %361 = vmatpush.bf16.msra.mxu0 %v352
        %362 = vmatmul.bf16.gmra.mxu0 %v303
        %v363 = vpop.f32.mrf.mxu0
        %v364 = vadd.f32 0.0, %v363
        %v365 = vpop.f32.mrf.mxu0
        %v366 = vadd.f32 0.0, %v365
        %367 = vmatmul.bf16.gmra.mxu0 %v306
        %v368 = vpop.f32.mrf.mxu0
        %v369 = vadd.f32 0.0, %v368
        %v370 = vpop.f32.mrf.mxu0
        %v371 = vadd.f32 0.0, %v370
        %372 = vmatmul.bf16.gmra.mxu0 %v309
        %v373 = vpop.f32.mrf.mxu0
        %v374 = vadd.f32 0.0, %v373
        %v375 = vpop.f32.mrf.mxu0
        %v376 = vadd.f32 0.0, %v375
        %377 = vmatmul.bf16.gmra.mxu0 %v312
        %v378 = vpop.f32.mrf.mxu0
        %v379 = vadd.f32 0.0, %v378
        %v380 = vpop.f32.mrf.mxu0
        %v381 = vadd.f32 0.0, %v380
        %382 = vmatmul.bf16.gmra.mxu0 %v315
        %v383 = vpop.f32.mrf.mxu0
        %v384 = vadd.f32 0.0, %v383
        %v385 = vpop.f32.mrf.mxu0
        %v386 = vadd.f32 0.0, %v385
        %387 = vmatmul.bf16.gmra.mxu0 %v318
        %v388 = vpop.f32.mrf.mxu0
        %v389 = vadd.f32 0.0, %v388
        %v390 = vpop.f32.mrf.mxu0
        %v391 = vadd.f32 0.0, %v390
        %392 = vmatmul.bf16.gmra.mxu0 %v321
        %v393 = vpop.f32.mrf.mxu0
        %v394 = vadd.f32 0.0, %v393
        %v395 = vpop.f32.mrf.mxu0
        %v396 = vadd.f32 0.0, %v395
        %397 = vmatmul.bf16.gmra.mxu0 %v324
        %v398 = vpop.f32.mrf.mxu0
        %v399 = vadd.f32 0.0, %v398
        %v400 = vpop.f32.mrf.mxu0
        %v401 = vadd.f32 0.0, %v400
        %402 = vmatmul.bf16.gmra.mxu0 %v327
        %v403 = vpop.f32.mrf.mxu0
        %v404 = vadd.f32 0.0, %v403
        %v405 = vpop.f32.mrf.mxu0
        %v406 = vadd.f32 0.0, %v405
        %407 = vmatmul.bf16.gmra.mxu0 %v330
        %v408 = vpop.f32.mrf.mxu0
        %v409 = vadd.f32 0.0, %v408
        %v410 = vpop.f32.mrf.mxu0
        %v411 = vadd.f32 0.0, %v410
        %412 = vmatmul.bf16.gmra.mxu0 %v333
        %v413 = vpop.f32.mrf.mxu0
        %v414 = vadd.f32 0.0, %v413
        %v415 = vpop.f32.mrf.mxu0
        %v416 = vadd.f32 0.0, %v415
        %417 = vmatmul.bf16.gmra.mxu0 %v336
        %v418 = vpop.f32.mrf.mxu0
        %v419 = vadd.f32 0.0, %v418
        %v420 = vpop.f32.mrf.mxu0
        %v421 = vadd.f32 0.0, %v420
        %422 = vmatmul.bf16.gmra.mxu0 %v339
        %v423 = vpop.f32.mrf.mxu0
        %v424 = vadd.f32 0.0, %v423
        %v425 = vpop.f32.mrf.mxu0
        %v426 = vadd.f32 0.0, %v425
        %427 = vmatmul.bf16.gmra.mxu0 %v342
        %v428 = vpop.f32.mrf.mxu0
        %v429 = vadd.f32 0.0, %v428
        %v430 = vpop.f32.mrf.mxu0
        %v431 = vadd.f32 0.0, %v430
        %432 = vmatmul.bf16.gmra.mxu0 %v345
        %v433 = vpop.f32.mrf.mxu0
        %v434 = vadd.f32 0.0, %v433
        %v435 = vpop.f32.mrf.mxu0
        %v436 = vadd.f32 0.0, %v435
        %437 = vmatmul.bf16.gmra.mxu0 %v348
        %v438 = vpop.f32.mrf.mxu0
        %v439 = vadd.f32 0.0, %v438
        %v440 = vpop.f32.mrf.mxu0
        %v441 = vadd.f32 0.0, %v440
        %442 = vdwg.mxu0
        %v445 = vunpack.c.l.b16 %v175
        %v446 = vunpack.c.l.b16 %v176
        %v447 = vpack.c.b16 %v446, %v445
        %v450 = vunpack.c.l.b16 %v211
        %v451 = vunpack.c.l.b16 %v212
        %v452 = vpack.c.b16 %v451, %v450
        %v454 = vsel %vm301, %v447, 0
        %v457 = vsel %vm350, %v452, 0
        %459 = vmatpush.bf16.msra.mxu0 0
        %460 = vmatpush.bf16.msra.mxu0 0
        %461 = vmatpush.bf16.msra.mxu0 0
        %462 = vmatpush.bf16.msra.mxu0 0
        %463 = vmatpush.bf16.msra.mxu0 0
        %464 = vmatpush.bf16.msra.mxu0 0
        %465 = vmatpush.bf16.msra.mxu0 0
        %466 = vmatpush.bf16.msra.mxu0 %v457
        %467 = vmatmul.bf16.gmra.mxu0 %v454
        %v468 = vpop.f32.mrf.mxu0
        %v469 = vadd.f32 %v364, %v468
        %v470 = vpop.f32.mrf.mxu0
        %v471 = vadd.f32 %v366, %v470
        %472 = vmatmul.bf16.gmra.mxu0 %v303
        %v473 = vpop.f32.mrf.mxu0
        %v474 = vadd.f32 %v369, %v473
        %v475 = vpop.f32.mrf.mxu0
        %v476 = vadd.f32 %v371, %v475
        %477 = vmatmul.bf16.gmra.mxu0 %v306
        %v478 = vpop.f32.mrf.mxu0
        %v479 = vadd.f32 %v374, %v478
        %v480 = vpop.f32.mrf.mxu0
        %v481 = vadd.f32 %v376, %v480
        %482 = vmatmul.bf16.gmra.mxu0 %v309
        %v483 = vpop.f32.mrf.mxu0
        %v484 = vadd.f32 %v379, %v483
        %v485 = vpop.f32.mrf.mxu0
        %v486 = vadd.f32 %v381, %v485
        %487 = vmatmul.bf16.gmra.mxu0 %v312
        %v488 = vpop.f32.mrf.mxu0
        %v489 = vadd.f32 %v384, %v488
        %v490 = vpop.f32.mrf.mxu0
        %v491 = vadd.f32 %v386, %v490
        %492 = vmatmul.bf16.gmra.mxu0 %v315
        %v493 = vpop.f32.mrf.mxu0
        %v494 = vadd.f32 %v389, %v493
        %v495 = vpop.f32.mrf.mxu0
        %v496 = vadd.f32 %v391, %v495
        %497 = vmatmul.bf16.gmra.mxu0 %v318
        %v498 = vpop.f32.mrf.mxu0
        %v499 = vadd.f32 %v394, %v498
        %v500 = vpop.f32.mrf.mxu0
        %v501 = vadd.f32 %v396, %v500
        %502 = vmatmul.bf16.gmra.mxu0 %v321
        %v503 = vpop.f32.mrf.mxu0
        %v504 = vadd.f32 %v399, %v503
        %v505 = vpop.f32.mrf.mxu0
        %v506 = vadd.f32 %v401, %v505
        %507 = vmatmul.bf16.gmra.mxu0 %v324
        %v508 = vpop.f32.mrf.mxu0
        %v509 = vadd.f32 %v404, %v508
        %v510 = vpop.f32.mrf.mxu0
        %v511 = vadd.f32 %v406, %v510
        %512 = vmatmul.bf16.gmra.mxu0 %v327
        %v513 = vpop.f32.mrf.mxu0
        %v514 = vadd.f32 %v409, %v513
        %v515 = vpop.f32.mrf.mxu0
        %v516 = vadd.f32 %v411, %v515
        %517 = vmatmul.bf16.gmra.mxu0 %v330
        %v518 = vpop.f32.mrf.mxu0
        %v519 = vadd.f32 %v414, %v518
        %v520 = vpop.f32.mrf.mxu0
        %v521 = vadd.f32 %v416, %v520
        %522 = vmatmul.bf16.gmra.mxu0 %v333
        %v523 = vpop.f32.mrf.mxu0
        %v524 = vadd.f32 %v419, %v523
        %v525 = vpop.f32.mrf.mxu0
        %v526 = vadd.f32 %v421, %v525
        %527 = vmatmul.bf16.gmra.mxu0 %v336
        %v528 = vpop.f32.mrf.mxu0
        %v529 = vadd.f32 %v424, %v528
        %v530 = vpop.f32.mrf.mxu0
        %v531 = vadd.f32 %v426, %v530
        %532 = vmatmul.bf16.gmra.mxu0 %v339
        %v533 = vpop.f32.mrf.mxu0
        %v534 = vadd.f32 %v429, %v533
        %v535 = vpop.f32.mrf.mxu0
        %v536 = vadd.f32 %v431, %v535
        %537 = vmatmul.bf16.gmra.mxu0 %v342
        %v538 = vpop.f32.mrf.mxu0
        %v539 = vadd.f32 %v434, %v538
        %v540 = vpop.f32.mrf.mxu0
        %v541 = vadd.f32 %v436, %v540
        %542 = vmatmul.bf16.gmra.mxu0 %v345
        %v543 = vpop.f32.mrf.mxu0
        %v544 = vadd.f32 %v439, %v543
        %v545 = vpop.f32.mrf.mxu0
        %v546 = vadd.f32 %v441, %v545
        %547 = vdwg.mxu0
        %s548 = scalar_lea.vmem %s1, 16
        %v549 = vld [vmem:[%s548] sm:$0xf]
        %v550 = vld [vmem:[%s548 + $0x4] sm:$0x3]
        %v553 = vunpack.c.l.b16 %v209
        %v554 = vunpack.c.l.b16 %v210
        %v555 = vpack.c.b16 %v554, %v553
        %v558 = vunpack.c.l.b16 %v549
        %v559 = vunpack.c.l.b16 %v550
        %v560 = vpack.c.b16 %v559, %v558
        %v562 = vsel %vm301, %v555, 0
        %v565 = vsel %vm350, %v560, 0
        %567 = vmatpush.bf16.msra.mxu0 0
        %568 = vmatpush.bf16.msra.mxu0 0
        %569 = vmatpush.bf16.msra.mxu0 0
        %570 = vmatpush.bf16.msra.mxu0 0
        %571 = vmatpush.bf16.msra.mxu0 0
        %572 = vmatpush.bf16.msra.mxu0 0
        %573 = vmatpush.bf16.msra.mxu0 0
        %574 = vmatpush.bf16.msra.mxu0 %v565
        %575 = vmatmul.bf16.gmra.mxu0 %v306
        %v576 = vpop.f32.mrf.mxu0
        %v577 = vadd.f32 0.0, %v576
        %v578 = vpop.f32.mrf.mxu0
        %v579 = vadd.f32 0.0, %v578
        %580 = vmatmul.bf16.gmra.mxu0 %v309
        %v581 = vpop.f32.mrf.mxu0
        %v582 = vadd.f32 0.0, %v581
        %v583 = vpop.f32.mrf.mxu0
        %v584 = vadd.f32 0.0, %v583
        %585 = vmatmul.bf16.gmra.mxu0 %v312
        %v586 = vpop.f32.mrf.mxu0
        %v587 = vadd.f32 0.0, %v586
        %v588 = vpop.f32.mrf.mxu0
        %v589 = vadd.f32 0.0, %v588
        %590 = vmatmul.bf16.gmra.mxu0 %v315
        %v591 = vpop.f32.mrf.mxu0
        %v592 = vadd.f32 0.0, %v591
        %v593 = vpop.f32.mrf.mxu0
        %v594 = vadd.f32 0.0, %v593
        %595 = vmatmul.bf16.gmra.mxu0 %v318
        %v596 = vpop.f32.mrf.mxu0
        %v597 = vadd.f32 0.0, %v596
        %v598 = vpop.f32.mrf.mxu0
        %v599 = vadd.f32 0.0, %v598
        %600 = vmatmul.bf16.gmra.mxu0 %v321
        %v601 = vpop.f32.mrf.mxu0
        %v602 = vadd.f32 0.0, %v601
        %v603 = vpop.f32.mrf.mxu0
        %v604 = vadd.f32 0.0, %v603
        %605 = vmatmul.bf16.gmra.mxu0 %v324
        %v606 = vpop.f32.mrf.mxu0
        %v607 = vadd.f32 0.0, %v606
        %v608 = vpop.f32.mrf.mxu0
        %v609 = vadd.f32 0.0, %v608
        %610 = vmatmul.bf16.gmra.mxu0 %v327
        %v611 = vpop.f32.mrf.mxu0
        %v612 = vadd.f32 0.0, %v611
        %v613 = vpop.f32.mrf.mxu0
        %v614 = vadd.f32 0.0, %v613
        %615 = vmatmul.bf16.gmra.mxu0 %v330
        %v616 = vpop.f32.mrf.mxu0
        %v617 = vadd.f32 0.0, %v616
        %v618 = vpop.f32.mrf.mxu0
        %v619 = vadd.f32 0.0, %v618
        %620 = vmatmul.bf16.gmra.mxu0 %v333
        %v621 = vpop.f32.mrf.mxu0
        %v622 = vadd.f32 0.0, %v621
        %v623 = vpop.f32.mrf.mxu0
        %v624 = vadd.f32 0.0, %v623
        %625 = vmatmul.bf16.gmra.mxu0 %v336
        %v626 = vpop.f32.mrf.mxu0
        %v627 = vadd.f32 0.0, %v626
        %v628 = vpop.f32.mrf.mxu0
        %v629 = vadd.f32 0.0, %v628
        %630 = vmatmul.bf16.gmra.mxu0 %v339
        %v631 = vpop.f32.mrf.mxu0
        %v632 = vadd.f32 0.0, %v631
        %v633 = vpop.f32.mrf.mxu0
        %v634 = vadd.f32 0.0, %v633
        %635 = vmatmul.bf16.gmra.mxu0 %v342
        %v636 = vpop.f32.mrf.mxu0
        %v637 = vadd.f32 0.0, %v636
        %v638 = vpop.f32.mrf.mxu0
        %v639 = vadd.f32 0.0, %v638
        %640 = vmatmul.bf16.gmra.mxu0 %v345
        %v641 = vpop.f32.mrf.mxu0
        %v642 = vadd.f32 0.0, %v641
        %v643 = vpop.f32.mrf.mxu0
        %v644 = vadd.f32 0.0, %v643
        %645 = vmatmul.bf16.gmra.mxu0 %v348
        %v646 = vpop.f32.mrf.mxu0
        %v647 = vadd.f32 0.0, %v646
        %v648 = vpop.f32.mrf.mxu0
        %v649 = vadd.f32 0.0, %v648
        %650 = vmatmul.bf16.gmra.mxu0 %v562
        %v651 = vpop.f32.mrf.mxu0
        %v652 = vadd.f32 0.0, %v651
        %v653 = vpop.f32.mrf.mxu0
        %v654 = vadd.f32 0.0, %v653
        %655 = vdwg.mxu0
        %v656 = vadd.f32 %v469, %v577
        %v657 = vadd.f32 %v471, %v579
        %v658 = vadd.f32 %v474, %v582
        %v659 = vadd.f32 %v476, %v584
        %v660 = vadd.f32 %v479, %v587
        %v661 = vadd.f32 %v481, %v589
        %v662 = vadd.f32 %v484, %v592
        %v663 = vadd.f32 %v486, %v594
        %v664 = vadd.f32 %v489, %v597
        %v665 = vadd.f32 %v491, %v599
        %v666 = vadd.f32 %v494, %v602
        %v667 = vadd.f32 %v496, %v604
        %v668 = vadd.f32 %v499, %v607
        %v669 = vadd.f32 %v501, %v609
        %v670 = vadd.f32 %v504, %v612
        %v671 = vadd.f32 %v506, %v614
        %v672 = vadd.f32 %v509, %v617
        %v673 = vadd.f32 %v511, %v619
        %v674 = vadd.f32 %v514, %v622
        %v675 = vadd.f32 %v516, %v624
        %v676 = vadd.f32 %v519, %v627
        %v677 = vadd.f32 %v521, %v629
        %v678 = vadd.f32 %v524, %v632
        %v679 = vadd.f32 %v526, %v634
        %v680 = vadd.f32 %v529, %v637
        %v681 = vadd.f32 %v531, %v639
        %v682 = vadd.f32 %v534, %v642
        %v683 = vadd.f32 %v536, %v644
        %v684 = vadd.f32 %v539, %v647
        %v685 = vadd.f32 %v541, %v649
        %v686 = vadd.f32 %v544, %v652
        %v687 = vadd.f32 %v546, %v654
        %v688 = vld [vmem:[%s2] sm:$0x1]
        %v690 = vperm.slane %v688, 0
        %v692 = vadd.f32 %v656, %v690
        %v693 = vadd.f32 %v657, %v690
        %v694 = vadd.f32 %v658, %v690
        %v695 = vadd.f32 %v659, %v690
        %v696 = vadd.f32 %v660, %v690
        %v697 = vadd.f32 %v661, %v690
        %v698 = vadd.f32 %v662, %v690
        %v699 = vadd.f32 %v663, %v690
        %v700 = vadd.f32 %v664, %v690
        %v701 = vadd.f32 %v665, %v690
        %v702 = vadd.f32 %v666, %v690
        %v703 = vadd.f32 %v667, %v690
        %v704 = vadd.f32 %v668, %v690
        %v705 = vadd.f32 %v669, %v690
        %v706 = vadd.f32 %v670, %v690
        %v707 = vadd.f32 %v671, %v690
        %v708 = vadd.f32 %v672, %v690
        %v709 = vadd.f32 %v673, %v690
        %v710 = vadd.f32 %v674, %v690
        %v711 = vadd.f32 %v675, %v690
        %v712 = vadd.f32 %v676, %v690
        %v713 = vadd.f32 %v677, %v690
        %v714 = vadd.f32 %v678, %v690
        %v715 = vadd.f32 %v679, %v690
        %v716 = vadd.f32 %v680, %v690
        %v717 = vadd.f32 %v681, %v690
        %v718 = vadd.f32 %v682, %v690
        %v719 = vadd.f32 %v683, %v690
        %v720 = vadd.f32 %v684, %v690
        %v721 = vadd.f32 %v685, %v690
        %v722 = vadd.f32 %v686, %v690
        %v723 = vadd.f32 %v687, %v690
        %v724 = vmax.f32 %v692, 0.0
        %v725 = vmax.f32 %v693, 0.0
        %v726 = vmax.f32 %v694, 0.0
        %v727 = vmax.f32 %v695, 0.0
        %v728 = vmax.f32 %v696, 0.0
        %v729 = vmax.f32 %v697, 0.0
        %v730 = vmax.f32 %v698, 0.0
        %v731 = vmax.f32 %v699, 0.0
        %v732 = vmax.f32 %v700, 0.0
        %v733 = vmax.f32 %v701, 0.0
        %v734 = vmax.f32 %v702, 0.0
        %v735 = vmax.f32 %v703, 0.0
        %v736 = vmax.f32 %v704, 0.0
        %v737 = vmax.f32 %v705, 0.0
        %v738 = vmax.f32 %v706, 0.0
        %v739 = vmax.f32 %v707, 0.0
        %v740 = vmax.f32 %v708, 0.0
        %v741 = vmax.f32 %v709, 0.0
        %v742 = vmax.f32 %v710, 0.0
        %v743 = vmax.f32 %v711, 0.0
        %v744 = vmax.f32 %v712, 0.0
        %v745 = vmax.f32 %v713, 0.0
        %v746 = vmax.f32 %v714, 0.0
        %v747 = vmax.f32 %v715, 0.0
        %v748 = vmax.f32 %v716, 0.0
        %v749 = vmax.f32 %v717, 0.0
        %v750 = vmax.f32 %v718, 0.0
        %v751 = vmax.f32 %v719, 0.0
        %v752 = vmax.f32 %v720, 0.0
        %v753 = vmax.f32 %v721, 0.0
        %v754 = vmax.f32 %v722, 0.0
        %v755 = vmax.f32 %v723, 0.0
        %v756 = vadd.f32 %v724, %v725
        %v757 = vadd.f32 %v756, %v726
        %v758 = vadd.f32 %v757, %v727
        %v759 = vadd.f32 %v758, %v728
        %v760 = vadd.f32 %v759, %v729
        %v761 = vadd.f32 %v760, %v730
        %v762 = vadd.f32 %v761, %v731
        %v763 = vadd.f32 %v762, %v732
        %v764 = vadd.f32 %v763, %v733
        %v765 = vadd.f32 %v764, %v734
        %v766 = vadd.f32 %v765, %v735
        %v767 = vadd.f32 %v766, %v736
        %v768 = vadd.f32 %v767, %v737
        %v769 = vadd.f32 %v768, %v738
        %v770 = vadd.f32 %v769, %v739
        %v771 = vadd.f32 %v770, %v740
        %v772 = vadd.f32 %v771, %v741
        %v773 = vadd.f32 %v772, %v742
        %v774 = vadd.f32 %v773, %v743
        %v775 = vadd.f32 %v774, %v744
        %v776 = vadd.f32 %v775, %v745
        %v777 = vadd.f32 %v776, %v746
        %v778 = vadd.f32 %v777, %v747
        %v779 = vadd.f32 %v778, %v748
        %v780 = vadd.f32 %v779, %v749
        %v781 = vadd.f32 %v780, %v750
        %v782 = vadd.f32 %v781, %v751
        %v783 = vadd.f32 %v782, %v752
        %v784 = vadd.f32 %v783, %v753
        %v785 = vadd.f32 %v784, %v754
        %v786 = vadd.f32 %v785, %v755
        %v787 = vrot.slane %v786, 4
        %v788 = vadd.f32 %v786, %v787
        %v789 = vrot.slane %v788, 2
        %v790 = vadd.f32 %v788, %v789
        %v791 = vrot.slane %v790, 1
        %v792 = vadd.f32 %v790, %v791
        %v793 = vmul.f32 %v792, 0.00390625
        %s794 = scalar_lea.vmem %s172, 144
        %v795 = vld [vmem:[%s794] sm:$0xf]
        %v796 = vld [vmem:[%s794 + $0x4] sm:$0xf]
        %v797 = vld [vmem:[%s794 + $0x8] sm:$0xf]
        %v798 = vld [vmem:[%s794 + $0xc] sm:$0xf]
        %v799 = vld [vmem:[%s794 + $0x10] sm:$0xf]
        %v800 = vld [vmem:[%s794 + $0x14] sm:$0xf]
        %v801 = vld [vmem:[%s794 + $0x18] sm:$0xf]
        %v802 = vld [vmem:[%s794 + $0x1c] sm:$0xf]
        %v803 = vld [vmem:[%s794 + $0x20] sm:$0xf]
        %v804 = vld [vmem:[%s794 + $0x24] sm:$0xf]
        %v805 = vld [vmem:[%s794 + $0x28] sm:$0xf]
        %v806 = vld [vmem:[%s794 + $0x2c] sm:$0xf]
        %v807 = vld [vmem:[%s794 + $0x30] sm:$0xf]
        %v808 = vld [vmem:[%s794 + $0x34] sm:$0xf]
        %v809 = vld [vmem:[%s794 + $0x38] sm:$0xf]
        %v810 = vld [vmem:[%s794 + $0x3c] sm:$0xf]
        %v811 = vld [vmem:[%s794 + $0x40] sm:$0xf]
        %v812 = vld [vmem:[%s794 + $0x44] sm:$0xf]
        %v813 = vld [vmem:[%s794 + $0x48] sm:$0xf]
        %v814 = vld [vmem:[%s794 + $0x4c] sm:$0xf]
        %v815 = vld [vmem:[%s794 + $0x50] sm:$0xf]
        %v816 = vld [vmem:[%s794 + $0x54] sm:$0xf]
        %v817 = vld [vmem:[%s794 + $0x58] sm:$0xf]
        %v818 = vld [vmem:[%s794 + $0x5c] sm:$0xf]
        %v819 = vld [vmem:[%s794 + $0x60] sm:$0xf]
        %v820 = vld [vmem:[%s794 + $0x64] sm:$0xf]
        %v821 = vld [vmem:[%s794 + $0x68] sm:$0xf]
        %v822 = vld [vmem:[%s794 + $0x6c] sm:$0xf]
        %v823 = vld [vmem:[%s794 + $0x70] sm:$0xf]
        %v824 = vld [vmem:[%s794 + $0x74] sm:$0xf]
        %v825 = vld [vmem:[%s794 + $0x78] sm:$0xf]
        %v826 = vld [vmem:[%s794 + $0x7c] sm:$0xf]
        %v827 = vld [vmem:[%s794 + $0x80] sm:$0xf]
        %v828 = vld [vmem:[%s794 + $0x84] sm:$0xf]
        %v829 = vld [vmem:[%s794 + $0x88] sm:$0xf]
        %v830 = vld [vmem:[%s794 + $0x8c] sm:$0xf]
        %v863 = vunpack.c.l.b16 %v797
        %v864 = vunpack.c.l.b16 %v798
        %v865 = vunpack.c.l.b16 %v799
        %v866 = vunpack.c.l.b16 %v800
        %v867 = vunpack.c.l.b16 %v801
        %v868 = vunpack.c.l.b16 %v802
        %v869 = vunpack.c.l.b16 %v803
        %v870 = vunpack.c.l.b16 %v804
        %v871 = vunpack.c.l.b16 %v805
        %v872 = vunpack.c.l.b16 %v806
        %v873 = vunpack.c.l.b16 %v807
        %v874 = vunpack.c.l.b16 %v808
        %v875 = vunpack.c.l.b16 %v809
        %v876 = vunpack.c.l.b16 %v810
        %v877 = vunpack.c.l.b16 %v811
        %v878 = vunpack.c.l.b16 %v812
        %v879 = vunpack.c.l.b16 %v813
        %v880 = vunpack.c.l.b16 %v814
        %v881 = vunpack.c.l.b16 %v815
        %v882 = vunpack.c.l.b16 %v816
        %v883 = vunpack.c.l.b16 %v817
        %v884 = vunpack.c.l.b16 %v818
        %v885 = vunpack.c.l.b16 %v819
        %v886 = vunpack.c.l.b16 %v820
        %v887 = vunpack.c.l.b16 %v821
        %v888 = vunpack.c.l.b16 %v822
        %v889 = vunpack.c.l.b16 %v823
        %v890 = vunpack.c.l.b16 %v824
        %v891 = vunpack.c.l.b16 %v825
        %v892 = vunpack.c.l.b16 %v826
        %v893 = vunpack.c.l.b16 %v827
        %v894 = vunpack.c.l.b16 %v828
        %v895 = vpack.c.b16 %v864, %v863
        %v896 = vpack.c.b16 %v866, %v865
        %v897 = vpack.c.b16 %v868, %v867
        %v898 = vpack.c.b16 %v870, %v869
        %v899 = vpack.c.b16 %v872, %v871
        %v900 = vpack.c.b16 %v874, %v873
        %v901 = vpack.c.b16 %v876, %v875
        %v902 = vpack.c.b16 %v878, %v877
        %v903 = vpack.c.b16 %v880, %v879
        %v904 = vpack.c.b16 %v882, %v881
        %v905 = vpack.c.b16 %v884, %v883
        %v906 = vpack.c.b16 %v886, %v885
        %v907 = vpack.c.b16 %v888, %v887
        %v908 = vpack.c.b16 %v890, %v889
        %v909 = vpack.c.b16 %v892, %v891
        %v910 = vpack.c.b16 %v894, %v893
        %v912 = vsel %vm301, %v895, 0
        %v915 = vsel %vm301, %v896, 0
        %v918 = vsel %vm301, %v897, 0
        %v921 = vsel %vm301, %v898, 0
        %v924 = vsel %vm301, %v899, 0
        %v927 = vsel %vm301, %v900, 0
        %v930 = vsel %vm301, %v901, 0
        %v933 = vsel %vm301, %v902, 0
        %v936 = vsel %vm301, %v903, 0
        %v939 = vsel %vm301, %v904, 0
        %v942 = vsel %vm301, %v905, 0
        %v945 = vsel %vm301, %v906, 0
        %v948 = vsel %vm301, %v907, 0
        %v951 = vsel %vm301, %v908, 0
        %v954 = vsel %vm301, %v909, 0
        %v957 = vsel %vm301, %v910, 0
        %959 = vmatpush.bf16.msra.mxu0 0
        %960 = vmatpush.bf16.msra.mxu0 0
        %961 = vmatpush.bf16.msra.mxu0 0
        %962 = vmatpush.bf16.msra.mxu0 0
        %963 = vmatpush.bf16.msra.mxu0 0
        %964 = vmatpush.bf16.msra.mxu0 0
        %965 = vmatpush.bf16.msra.mxu0 0
        %966 = vmatpush.bf16.msra.mxu0 %v352
        %967 = vmatmul.bf16.gmra.mxu0 %v912
        %v968 = vpop.f32.mrf.mxu0
        %v969 = vadd.f32 0.0, %v968
        %v970 = vpop.f32.mrf.mxu0
        %v971 = vadd.f32 0.0, %v970
        %972 = vmatmul.bf16.gmra.mxu0 %v915
        %v973 = vpop.f32.mrf.mxu0
        %v974 = vadd.f32 0.0, %v973
        %v975 = vpop.f32.mrf.mxu0
        %v976 = vadd.f32 0.0, %v975
        %977 = vmatmul.bf16.gmra.mxu0 %v918
        %v978 = vpop.f32.mrf.mxu0
        %v979 = vadd.f32 0.0, %v978
        %v980 = vpop.f32.mrf.mxu0
        %v981 = vadd.f32 0.0, %v980
        %982 = vmatmul.bf16.gmra.mxu0 %v921
        %v983 = vpop.f32.mrf.mxu0
        %v984 = vadd.f32 0.0, %v983
        %v985 = vpop.f32.mrf.mxu0
        %v986 = vadd.f32 0.0, %v985
        %987 = vmatmul.bf16.gmra.mxu0 %v924
        %v988 = vpop.f32.mrf.mxu0
        %v989 = vadd.f32 0.0, %v988
        %v990 = vpop.f32.mrf.mxu0
        %v991 = vadd.f32 0.0, %v990
        %992 = vmatmul.bf16.gmra.mxu0 %v927
        %v993 = vpop.f32.mrf.mxu0
        %v994 = vadd.f32 0.0, %v993
        %v995 = vpop.f32.mrf.mxu0
        %v996 = vadd.f32 0.0, %v995
        %997 = vmatmul.bf16.gmra.mxu0 %v930
        %v998 = vpop.f32.mrf.mxu0
        %v999 = vadd.f32 0.0, %v998
        %v1000 = vpop.f32.mrf.mxu0
        %v1001 = vadd.f32 0.0, %v1000
        %1002 = vmatmul.bf16.gmra.mxu0 %v933
        %v1003 = vpop.f32.mrf.mxu0
        %v1004 = vadd.f32 0.0, %v1003
        %v1005 = vpop.f32.mrf.mxu0
        %v1006 = vadd.f32 0.0, %v1005
        %1007 = vmatmul.bf16.gmra.mxu0 %v936
        %v1008 = vpop.f32.mrf.mxu0
        %v1009 = vadd.f32 0.0, %v1008
        %v1010 = vpop.f32.mrf.mxu0
        %v1011 = vadd.f32 0.0, %v1010
        %1012 = vmatmul.bf16.gmra.mxu0 %v939
        %v1013 = vpop.f32.mrf.mxu0
        %v1014 = vadd.f32 0.0, %v1013
        %v1015 = vpop.f32.mrf.mxu0
        %v1016 = vadd.f32 0.0, %v1015
        %1017 = vmatmul.bf16.gmra.mxu0 %v942
        %v1018 = vpop.f32.mrf.mxu0
        %v1019 = vadd.f32 0.0, %v1018
        %v1020 = vpop.f32.mrf.mxu0
        %v1021 = vadd.f32 0.0, %v1020
        %1022 = vmatmul.bf16.gmra.mxu0 %v945
        %v1023 = vpop.f32.mrf.mxu0
        %v1024 = vadd.f32 0.0, %v1023
        %v1025 = vpop.f32.mrf.mxu0
        %v1026 = vadd.f32 0.0, %v1025
        %1027 = vmatmul.bf16.gmra.mxu0 %v948
        %v1028 = vpop.f32.mrf.mxu0
        %v1029 = vadd.f32 0.0, %v1028
        %v1030 = vpop.f32.mrf.mxu0
        %v1031 = vadd.f32 0.0, %v1030
        %1032 = vmatmul.bf16.gmra.mxu0 %v951
        %v1033 = vpop.f32.mrf.mxu0
        %v1034 = vadd.f32 0.0, %v1033
        %v1035 = vpop.f32.mrf.mxu0
        %v1036 = vadd.f32 0.0, %v1035
        %1037 = vmatmul.bf16.gmra.mxu0 %v954
        %v1038 = vpop.f32.mrf.mxu0
        %v1039 = vadd.f32 0.0, %v1038
        %v1040 = vpop.f32.mrf.mxu0
        %v1041 = vadd.f32 0.0, %v1040
        %1042 = vmatmul.bf16.gmra.mxu0 %v957
        %v1043 = vpop.f32.mrf.mxu0
        %v1044 = vadd.f32 0.0, %v1043
        %v1045 = vpop.f32.mrf.mxu0
        %v1046 = vadd.f32 0.0, %v1045
        %1047 = vdwg.mxu0
        %v1050 = vunpack.c.l.b16 %v795
        %v1051 = vunpack.c.l.b16 %v796
        %v1052 = vpack.c.b16 %v1051, %v1050
        %v1054 = vsel %vm301, %v1052, 0
        %1056 = vmatpush.bf16.msra.mxu0 0
        %1057 = vmatpush.bf16.msra.mxu0 0
        %1058 = vmatpush.bf16.msra.mxu0 0
        %1059 = vmatpush.bf16.msra.mxu0 0
        %1060 = vmatpush.bf16.msra.mxu0 0
        %1061 = vmatpush.bf16.msra.mxu0 0
        %1062 = vmatpush.bf16.msra.mxu0 0
        %1063 = vmatpush.bf16.msra.mxu0 %v457
        %1064 = vmatmul.bf16.gmra.mxu0 %v1054
        %v1065 = vpop.f32.mrf.mxu0
        %v1066 = vadd.f32 %v969, %v1065
        %v1067 = vpop.f32.mrf.mxu0
        %v1068 = vadd.f32 %v971, %v1067
        %1069 = vmatmul.bf16.gmra.mxu0 %v912
        %v1070 = vpop.f32.mrf.mxu0
        %v1071 = vadd.f32 %v974, %v1070
        %v1072 = vpop.f32.mrf.mxu0
        %v1073 = vadd.f32 %v976, %v1072
        %1074 = vmatmul.bf16.gmra.mxu0 %v915
        %v1075 = vpop.f32.mrf.mxu0
        %v1076 = vadd.f32 %v979, %v1075
        %v1077 = vpop.f32.mrf.mxu0
        %v1078 = vadd.f32 %v981, %v1077
        %1079 = vmatmul.bf16.gmra.mxu0 %v918
        %v1080 = vpop.f32.mrf.mxu0
        %v1081 = vadd.f32 %v984, %v1080
        %v1082 = vpop.f32.mrf.mxu0
        %v1083 = vadd.f32 %v986, %v1082
        %1084 = vmatmul.bf16.gmra.mxu0 %v921
        %v1085 = vpop.f32.mrf.mxu0
        %v1086 = vadd.f32 %v989, %v1085
        %v1087 = vpop.f32.mrf.mxu0
        %v1088 = vadd.f32 %v991, %v1087
        %1089 = vmatmul.bf16.gmra.mxu0 %v924
        %v1090 = vpop.f32.mrf.mxu0
        %v1091 = vadd.f32 %v994, %v1090
        %v1092 = vpop.f32.mrf.mxu0
        %v1093 = vadd.f32 %v996, %v1092
        %1094 = vmatmul.bf16.gmra.mxu0 %v927
        %v1095 = vpop.f32.mrf.mxu0
        %v1096 = vadd.f32 %v999, %v1095
        %v1097 = vpop.f32.mrf.mxu0
        %v1098 = vadd.f32 %v1001, %v1097
        %1099 = vmatmul.bf16.gmra.mxu0 %v930
        %v1100 = vpop.f32.mrf.mxu0
        %v1101 = vadd.f32 %v1004, %v1100
        %v1102 = vpop.f32.mrf.mxu0
        %v1103 = vadd.f32 %v1006, %v1102
        %1104 = vmatmul.bf16.gmra.mxu0 %v933
        %v1105 = vpop.f32.mrf.mxu0
        %v1106 = vadd.f32 %v1009, %v1105
        %v1107 = vpop.f32.mrf.mxu0
        %v1108 = vadd.f32 %v1011, %v1107
        %1109 = vmatmul.bf16.gmra.mxu0 %v936
        %v1110 = vpop.f32.mrf.mxu0
        %v1111 = vadd.f32 %v1014, %v1110
        %v1112 = vpop.f32.mrf.mxu0
        %v1113 = vadd.f32 %v1016, %v1112
        %1114 = vmatmul.bf16.gmra.mxu0 %v939
        %v1115 = vpop.f32.mrf.mxu0
        %v1116 = vadd.f32 %v1019, %v1115
        %v1117 = vpop.f32.mrf.mxu0
        %v1118 = vadd.f32 %v1021, %v1117
        %1119 = vmatmul.bf16.gmra.mxu0 %v942
        %v1120 = vpop.f32.mrf.mxu0
        %v1121 = vadd.f32 %v1024, %v1120
        %v1122 = vpop.f32.mrf.mxu0
        %v1123 = vadd.f32 %v1026, %v1122
        %1124 = vmatmul.bf16.gmra.mxu0 %v945
        %v1125 = vpop.f32.mrf.mxu0
        %v1126 = vadd.f32 %v1029, %v1125
        %v1127 = vpop.f32.mrf.mxu0
        %v1128 = vadd.f32 %v1031, %v1127
        %1129 = vmatmul.bf16.gmra.mxu0 %v948
        %v1130 = vpop.f32.mrf.mxu0
        %v1131 = vadd.f32 %v1034, %v1130
        %v1132 = vpop.f32.mrf.mxu0
        %v1133 = vadd.f32 %v1036, %v1132
        %1134 = vmatmul.bf16.gmra.mxu0 %v951
        %v1135 = vpop.f32.mrf.mxu0
        %v1136 = vadd.f32 %v1039, %v1135
        %v1137 = vpop.f32.mrf.mxu0
        %v1138 = vadd.f32 %v1041, %v1137
        %1139 = vmatmul.bf16.gmra.mxu0 %v954
        %v1140 = vpop.f32.mrf.mxu0
        %v1141 = vadd.f32 %v1044, %v1140
        %v1142 = vpop.f32.mrf.mxu0
        %v1143 = vadd.f32 %v1046, %v1142
        %1144 = vdwg.mxu0
        %v1147 = vunpack.c.l.b16 %v829
        %v1148 = vunpack.c.l.b16 %v830
        %v1149 = vpack.c.b16 %v1148, %v1147
        %v1151 = vsel %vm301, %v1149, 0
        %1153 = vmatpush.bf16.msra.mxu0 0
        %1154 = vmatpush.bf16.msra.mxu0 0
        %1155 = vmatpush.bf16.msra.mxu0 0
        %1156 = vmatpush.bf16.msra.mxu0 0
        %1157 = vmatpush.bf16.msra.mxu0 0
        %1158 = vmatpush.bf16.msra.mxu0 0
        %1159 = vmatpush.bf16.msra.mxu0 0
        %1160 = vmatpush.bf16.msra.mxu0 %v565
        %1161 = vmatmul.bf16.gmra.mxu0 %v915
        %v1162 = vpop.f32.mrf.mxu0
        %v1163 = vadd.f32 0.0, %v1162
        %v1164 = vpop.f32.mrf.mxu0
        %v1165 = vadd.f32 0.0, %v1164
        %1166 = vmatmul.bf16.gmra.mxu0 %v918
        %v1167 = vpop.f32.mrf.mxu0
        %v1168 = vadd.f32 0.0, %v1167
        %v1169 = vpop.f32.mrf.mxu0
        %v1170 = vadd.f32 0.0, %v1169
        %1171 = vmatmul.bf16.gmra.mxu0 %v921
        %v1172 = vpop.f32.mrf.mxu0
        %v1173 = vadd.f32 0.0, %v1172
        %v1174 = vpop.f32.mrf.mxu0
        %v1175 = vadd.f32 0.0, %v1174
        %1176 = vmatmul.bf16.gmra.mxu0 %v924
        %v1177 = vpop.f32.mrf.mxu0
        %v1178 = vadd.f32 0.0, %v1177
        %v1179 = vpop.f32.mrf.mxu0
        %v1180 = vadd.f32 0.0, %v1179
        %1181 = vmatmul.bf16.gmra.mxu0 %v927
        %v1182 = vpop.f32.mrf.mxu0
        %v1183 = vadd.f32 0.0, %v1182
        %v1184 = vpop.f32.mrf.mxu0
        %v1185 = vadd.f32 0.0, %v1184
        %1186 = vmatmul.bf16.gmra.mxu0 %v930
        %v1187 = vpop.f32.mrf.mxu0
        %v1188 = vadd.f32 0.0, %v1187
        %v1189 = vpop.f32.mrf.mxu0
        %v1190 = vadd.f32 0.0, %v1189
        %1191 = vmatmul.bf16.gmra.mxu0 %v933
        %v1192 = vpop.f32.mrf.mxu0
        %v1193 = vadd.f32 0.0, %v1192
        %v1194 = vpop.f32.mrf.mxu0
        %v1195 = vadd.f32 0.0, %v1194
        %1196 = vmatmul.bf16.gmra.mxu0 %v936
        %v1197 = vpop.f32.mrf.mxu0
        %v1198 = vadd.f32 0.0, %v1197
        %v1199 = vpop.f32.mrf.mxu0
        %v1200 = vadd.f32 0.0, %v1199
        %1201 = vmatmul.bf16.gmra.mxu0 %v939
        %v1202 = vpop.f32.mrf.mxu0
        %v1203 = vadd.f32 0.0, %v1202
        %v1204 = vpop.f32.mrf.mxu0
        %v1205 = vadd.f32 0.0, %v1204
        %1206 = vmatmul.bf16.gmra.mxu0 %v942
        %v1207 = vpop.f32.mrf.mxu0
        %v1208 = vadd.f32 0.0, %v1207
        %v1209 = vpop.f32.mrf.mxu0
        %v1210 = vadd.f32 0.0, %v1209
        %1211 = vmatmul.bf16.gmra.mxu0 %v945
        %v1212 = vpop.f32.mrf.mxu0
        %v1213 = vadd.f32 0.0, %v1212
        %v1214 = vpop.f32.mrf.mxu0
        %v1215 = vadd.f32 0.0, %v1214
        %1216 = vmatmul.bf16.gmra.mxu0 %v948
        %v1217 = vpop.f32.mrf.mxu0
        %v1218 = vadd.f32 0.0, %v1217
        %v1219 = vpop.f32.mrf.mxu0
        %v1220 = vadd.f32 0.0, %v1219
        %1221 = vmatmul.bf16.gmra.mxu0 %v951
        %v1222 = vpop.f32.mrf.mxu0
        %v1223 = vadd.f32 0.0, %v1222
        %v1224 = vpop.f32.mrf.mxu0
        %v1225 = vadd.f32 0.0, %v1224
        %1226 = vmatmul.bf16.gmra.mxu0 %v954
        %v1227 = vpop.f32.mrf.mxu0
        %v1228 = vadd.f32 0.0, %v1227
        %v1229 = vpop.f32.mrf.mxu0
        %v1230 = vadd.f32 0.0, %v1229
        %1231 = vmatmul.bf16.gmra.mxu0 %v957
        %v1232 = vpop.f32.mrf.mxu0
        %v1233 = vadd.f32 0.0, %v1232
        %v1234 = vpop.f32.mrf.mxu0
        %v1235 = vadd.f32 0.0, %v1234
        %1236 = vmatmul.bf16.gmra.mxu0 %v1151
        %v1237 = vpop.f32.mrf.mxu0
        %v1238 = vadd.f32 0.0, %v1237
        %v1239 = vpop.f32.mrf.mxu0
        %v1240 = vadd.f32 0.0, %v1239
        %1241 = vdwg.mxu0
        %v1242 = vadd.f32 %v1066, %v1163
        %v1243 = vadd.f32 %v1068, %v1165
        %v1244 = vadd.f32 %v1071, %v1168
        %v1245 = vadd.f32 %v1073, %v1170
        %v1246 = vadd.f32 %v1076, %v1173
        %v1247 = vadd.f32 %v1078, %v1175
        %v1248 = vadd.f32 %v1081, %v1178
        %v1249 = vadd.f32 %v1083, %v1180
        %v1250 = vadd.f32 %v1086, %v1183
        %v1251 = vadd.f32 %v1088, %v1185
        %v1252 = vadd.f32 %v1091, %v1188
        %v1253 = vadd.f32 %v1093, %v1190
        %v1254 = vadd.f32 %v1096, %v1193
        %v1255 = vadd.f32 %v1098, %v1195
        %v1256 = vadd.f32 %v1101, %v1198
        %v1257 = vadd.f32 %v1103, %v1200
        %v1258 = vadd.f32 %v1106, %v1203
        %v1259 = vadd.f32 %v1108, %v1205
        %v1260 = vadd.f32 %v1111, %v1208
        %v1261 = vadd.f32 %v1113, %v1210
        %v1262 = vadd.f32 %v1116, %v1213
        %v1263 = vadd.f32 %v1118, %v1215
        %v1264 = vadd.f32 %v1121, %v1218
        %v1265 = vadd.f32 %v1123, %v1220
        %v1266 = vadd.f32 %v1126, %v1223
        %v1267 = vadd.f32 %v1128, %v1225
        %v1268 = vadd.f32 %v1131, %v1228
        %v1269 = vadd.f32 %v1133, %v1230
        %v1270 = vadd.f32 %v1136, %v1233
        %v1271 = vadd.f32 %v1138, %v1235
        %v1272 = vadd.f32 %v1141, %v1238
        %v1273 = vadd.f32 %v1143, %v1240
        %v1274 = vadd.f32 %v1242, %v690
        %v1275 = vadd.f32 %v1243, %v690
        %v1276 = vadd.f32 %v1244, %v690
        %v1277 = vadd.f32 %v1245, %v690
        %v1278 = vadd.f32 %v1246, %v690
        %v1279 = vadd.f32 %v1247, %v690
        %v1280 = vadd.f32 %v1248, %v690
        %v1281 = vadd.f32 %v1249, %v690
        %v1282 = vadd.f32 %v1250, %v690
        %v1283 = vadd.f32 %v1251, %v690
        %v1284 = vadd.f32 %v1252, %v690
        %v1285 = vadd.f32 %v1253, %v690
        %v1286 = vadd.f32 %v1254, %v690
        %v1287 = vadd.f32 %v1255, %v690
        %v1288 = vadd.f32 %v1256, %v690
        %v1289 = vadd.f32 %v1257, %v690
        %v1290 = vadd.f32 %v1258, %v690
        %v1291 = vadd.f32 %v1259, %v690
        %v1292 = vadd.f32 %v1260, %v690
        %v1293 = vadd.f32 %v1261, %v690
        %v1294 = vadd.f32 %v1262, %v690
        %v1295 = vadd.f32 %v1263, %v690
        %v1296 = vadd.f32 %v1264, %v690
        %v1297 = vadd.f32 %v1265, %v690
        %v1298 = vadd.f32 %v1266, %v690
        %v1299 = vadd.f32 %v1267, %v690
        %v1300 = vadd.f32 %v1268, %v690
        %v1301 = vadd.f32 %v1269, %v690
        %v1302 = vadd.f32 %v1270, %v690
        %v1303 = vadd.f32 %v1271, %v690
        %v1304 = vadd.f32 %v1272, %v690
        %v1305 = vadd.f32 %v1273, %v690
        %v1306 = vmax.f32 %v1274, 0.0
        %v1307 = vmax.f32 %v1275, 0.0
        %v1308 = vmax.f32 %v1276, 0.0
        %v1309 = vmax.f32 %v1277, 0.0
        %v1310 = vmax.f32 %v1278, 0.0
        %v1311 = vmax.f32 %v1279, 0.0
        %v1312 = vmax.f32 %v1280, 0.0
        %v1313 = vmax.f32 %v1281, 0.0
        %v1314 = vmax.f32 %v1282, 0.0
        %v1315 = vmax.f32 %v1283, 0.0
        %v1316 = vmax.f32 %v1284, 0.0
        %v1317 = vmax.f32 %v1285, 0.0
        %v1318 = vmax.f32 %v1286, 0.0
        %v1319 = vmax.f32 %v1287, 0.0
        %v1320 = vmax.f32 %v1288, 0.0
        %v1321 = vmax.f32 %v1289, 0.0
        %v1322 = vmax.f32 %v1290, 0.0
        %v1323 = vmax.f32 %v1291, 0.0
        %v1324 = vmax.f32 %v1292, 0.0
        %v1325 = vmax.f32 %v1293, 0.0
        %v1326 = vmax.f32 %v1294, 0.0
        %v1327 = vmax.f32 %v1295, 0.0
        %v1328 = vmax.f32 %v1296, 0.0
        %v1329 = vmax.f32 %v1297, 0.0
        %v1330 = vmax.f32 %v1298, 0.0
        %v1331 = vmax.f32 %v1299, 0.0
        %v1332 = vmax.f32 %v1300, 0.0
        %v1333 = vmax.f32 %v1301, 0.0
        %v1334 = vmax.f32 %v1302, 0.0
        %v1335 = vmax.f32 %v1303, 0.0
        %v1336 = vmax.f32 %v1304, 0.0
        %v1337 = vmax.f32 %v1305, 0.0
        %v1338 = vadd.f32 %v1306, %v1307
        %v1339 = vadd.f32 %v1338, %v1308
        %v1340 = vadd.f32 %v1339, %v1309
        %v1341 = vadd.f32 %v1340, %v1310
        %v1342 = vadd.f32 %v1341, %v1311
        %v1343 = vadd.f32 %v1342, %v1312
        %v1344 = vadd.f32 %v1343, %v1313
        %v1345 = vadd.f32 %v1344, %v1314
        %v1346 = vadd.f32 %v1345, %v1315
        %v1347 = vadd.f32 %v1346, %v1316
        %v1348 = vadd.f32 %v1347, %v1317
        %v1349 = vadd.f32 %v1348, %v1318
        %v1350 = vadd.f32 %v1349, %v1319
        %v1351 = vadd.f32 %v1350, %v1320
        %v1352 = vadd.f32 %v1351, %v1321
        %v1353 = vadd.f32 %v1352, %v1322
        %v1354 = vadd.f32 %v1353, %v1323
        %v1355 = vadd.f32 %v1354, %v1324
        %v1356 = vadd.f32 %v1355, %v1325
        %v1357 = vadd.f32 %v1356, %v1326
        %v1358 = vadd.f32 %v1357, %v1327
        %v1359 = vadd.f32 %v1358, %v1328
        %v1360 = vadd.f32 %v1359, %v1329
        %v1361 = vadd.f32 %v1360, %v1330
        %v1362 = vadd.f32 %v1361, %v1331
        %v1363 = vadd.f32 %v1362, %v1332
        %v1364 = vadd.f32 %v1363, %v1333
        %v1365 = vadd.f32 %v1364, %v1334
        %v1366 = vadd.f32 %v1365, %v1335
        %v1367 = vadd.f32 %v1366, %v1336
        %v1368 = vadd.f32 %v1367, %v1337
        %v1369 = vrot.slane %v1368, 4
        %v1370 = vadd.f32 %v1368, %v1369
        %v1371 = vrot.slane %v1370, 2
        %v1372 = vadd.f32 %v1370, %v1371
        %v1373 = vrot.slane %v1372, 1
        %v1374 = vadd.f32 %v1372, %v1373
        %v1375 = vmul.f32 %v1374, 0.00390625
        %vm1376 = vcmask 1040384
        %v1377 = vsel %vm1376, %v793, %v1375
        %1378 = vst [vmem:[%s166] sm:$0x3] %v1377
        %s1379 = sand.u32 %s93, 1
        %s1380 = scalar_lea.sflag [#allocation3], %s1379
        %s1381 = sand.u32 %s93, 1
        %s1382 = smul.addr %s1381, 2
        %s1383 = scalar_lea.vmem [#allocation2], %s1382
        // Predicated region
        $region33: #{tpu_custom_call.1} parent=31 // pred_check
          %p1384 = pneg %p103
        $region34: #{tpu_custom_call.1} parent=31 // pred_check_branch
          %1386 = sbr.rel (%p1384) target = $region36
        $region35: #{tpu_custom_call.1} parent=31 // pred_region
          %1388 = vsyncadd %s1380, 0
          %s1389 = smul.addr %s17, 2
          %s1390 = scalar_lea.hbm %s3, %s1389
          %s1392 = sshll.u32 %s1383, 4
          %s1393 = int_to_ptr.vmem [resolvable:$true] %s1392
          %s1394 = sshll.u32 %s1390, 4
          %s1395 = int_to_ptr.hbm [resolvable:$true] %s1394
          %1397 = dma.vmem_to_hbm [thread:$0]  %s1393, 32, %s1395, %s1380
        $region36: #{tpu_custom_call.1} parent=31 // pred_fallthru
          _
      $region32: #{tpu_custom_call.1} parent=5 // pred_fallthru
        _
      %p1398 = scmp.le.s32.totalorder 2, %s12
      // Predicated region
      $region37: #{tpu_custom_call.1} parent=5 // pred_check
        %p1399 = pneg %p1398
      $region38: #{tpu_custom_call.1} parent=5 // pred_check_branch
        %1401 = sbr.rel (%p1399) target = $region40
      $region39: #{tpu_custom_call.1} parent=5 // pred_region
        %s1402 = ssub.s32 %s12, 2
        // Predicated region
        $region41: #{tpu_custom_call.1} parent=39 // pred_check
          %p1403 = pneg %p109
        $region42: #{tpu_custom_call.1} parent=39 // pred_check_branch
          %1405 = sbr.rel (%p1403) target = $region44
        $region43: #{tpu_custom_call.1} parent=39 // pred_region
          %s1406 = sand.u32 %s94, 1
          %s1407 = scalar_lea.sflag [#allocation3], %s1406
          %s1408 = sand.u32 %s94, 1
          %s1409 = smul.addr %s1408, 2
          %s1410 = scalar_lea.vmem [#allocation2], %s1409
          %1412 = dma.done %s1407, 32
        $region44: #{tpu_custom_call.1} parent=39 // pred_fallthru
          _
      $region40: #{tpu_custom_call.1} parent=5 // pred_fallthru
        _
    $region6: #{tpu_custom_call.1} parent=1 // loop_footer
      %s16 = sadd.s32 1, %s12
    $region7: #{tpu_custom_call.1} parent=1 // loop_footer_branch
      %11 = sbr.rel target = $region3
    $region8: #{tpu_custom_call.1} parent=1 // loop_exit
      _
    %1413 = vsyncpa [#allocation3], 1
    %s1414 = scalar_lea.sflag [#allocation3], 1
    %1415 = vsyncpa %s1414, 1

</llo_original>
